<compile_context>
chip_gen: v7x
topology: tpu7x:2x2x1
jax: 0.10.0
libtpu: 0.0.40
codegen_flags: <defaults>
</compile_context>

<pallas_src>
import jax
import jax.numpy as jnp
import numpy as np
from jax.experimental import pallas as pl
from jax.experimental.pallas import tpu as pltpu


_TILE_BUDGET_BYTES = 2 * 1024 * 1024    # per-block target; ~4 live buffers ≈ 8 MiB
_VMEM_LIMIT_BYTES = 32 * 1024 * 1024    # explicit scoped-VMEM limit (safe on v5e/v6e/v7x)


def _prod(dims):
    r = 1
    for d in dims:
        r *= int(d)
    return r


def _choose_tile(dim, align, cap):
    """Largest multiple of `align` that divides `dim` and is <= cap.
    Falls back to the full dim when `dim` is not a multiple of `align`
    (full-dim blocks are always legal for the last two block dims)."""
    dim = int(dim)
    if dim % align != 0:
        return dim
    cap = max(align, min(int(cap), dim))
    best = align
    t = align
    while t <= cap:
        if dim % t == 0:
            best = t
        t += align
    return best


def _factor_trailing(ml):
    """Factor the merged trailing extent `ml` into (sublane_dim, lane_dim) with
    the lane dim a multiple of 128 whenever possible (lane-dense output slabs).
    Returns (m2, l2) with m2 * l2 == ml."""
    ml = int(ml)
    l2 = 1
    cand = 128
    top = min(ml, 4096)                  # cap lane extent at 4096 (16 KiB f32 / row)
    while cand <= top:
        if ml % cand == 0:
            l2 = cand
        cand += 128
    if l2 == 1:
        return 1, ml                     # no 128-multiple divisor: full run as lanes
    return ml // l2, l2


# --------------------------- kernel bodies ---------------------------------

def _copy_kernel(x_ref, o_ref):
    # Pure copy: the transpose is performed by the BlockSpec index maps.
    o_ref[...] = x_ref[...]


def _swap_minor_kernel(x_ref, o_ref):
    # block (1, TA, TL) -> (1, TL, TA): minor-two-dims transpose (XLU-friendly,
    # whole-vreg when TA == TL == 128).
    o_ref[...] = jnp.swapaxes(x_ref[...], 1, 2)


def _swap_lane_kernel(x_ref, o_ref):
    # block (1, TA, TQ, TL) -> (1, TL, TQ, TA).  Decomposed into two minor-two
    # swaps plus one lane-preserving permutation so every step is a Mosaic
    # supported transpose class.
    x = x_ref[...]
    y = jnp.swapaxes(x, 2, 3)            # (1, TA, TL, TQ)  minor-two swap
    y = jnp.swapaxes(y, 1, 2)            # (1, TL, TA, TQ)  lane dim untouched
    o_ref[...] = jnp.swapaxes(y, 2, 3)   # (1, TL, TQ, TA)  minor-two swap


# ----------------------------- wrapper --------------------------------------

def transpose_x(x, dim1, dim2):
    """Pallas equivalent of torch.Tensor.transpose(dim1, dim2)."""
    nd = x.ndim
    d1, d2 = sorted((dim1 % nd, dim2 % nd))
    if d1 == d2:
        return x

    shape = x.shape
    itemsize = int(jnp.dtype(x.dtype).itemsize)
    budget_elems = max(1, _TILE_BUDGET_BYTES // itemsize)

    P = _prod(shape[:d1])                        # dims before the first swapped axis
    A = int(shape[d1])                           # first swapped axis
    Q = _prod(shape[d1 + 1:d2])                  # dims strictly between the two

    out_full_shape = list(shape)
    out_full_shape[d1], out_full_shape[d2] = out_full_shape[d2], out_full_shape[d1]
    out_full_shape = tuple(out_full_shape)

    if d2 == nd - 1:
        # ---------------- lane axis participates in the swap ----------------
        L = int(shape[d2])
        TA = 128 if A % 128 == 0 else A          # output last dim: x128 or full
        TL = 128 if L % 128 == 0 else L          # input last dim:  x128 or full
        if Q == 1:
            # Adjacent last-two swap / 2-D matrix transpose.
            xr = x.reshape(P, A, L)
            grid = (P, A // TA, L // TL)
            in_spec = pl.BlockSpec((1, TA, TL), lambda p, a, l: (p, a, l))
            out_spec = pl.BlockSpec((1, TL, TA), lambda p, a, l: (p, l, a))
            out_shape = jax.ShapeDtypeStruct((P, L, A), x.dtype)
            kernel = _swap_minor_kernel
        else:
            # General lane swap with untouched dims in between (tiled in
            # sublane chunks of 8 along the untouched middle extent).
            xr = x.reshape(P, A, Q, L)
            TQ = _choose_tile(Q, 8, max(8, budget_elems // max(1, TA * TL)))
            grid = (P, A // TA, Q // TQ, L // TL)
            in_spec = pl.BlockSpec((1, TA, TQ, TL), lambda p, a, q, l: (p, a, q, l))
            out_spec = pl.BlockSpec((1, TL, TQ, TA), lambda p, a, q, l: (p, l, q, a))
            out_shape = jax.ShapeDtypeStruct((P, L, Q, A), x.dtype)
            kernel = _swap_lane_kernel
    else:
        # -------- last axis untouched: transpose == DMA address permutation --
        B = int(shape[d2])                       # second swapped axis
        ML = _prod(shape[d2 + 1:])               # merged trailing (untouched) dims
        M2, L2 = _factor_trailing(ML)            # lane-dense re-factorization
        TM = _choose_tile(M2, 8, max(8, budget_elems // L2))

        xr = x.reshape(P, A, Q, B, M2, L2)
        grid = (P, A, Q, B, M2 // TM)
        in_spec = pl.BlockSpec(
            (1, 1, 1, 1, TM, L2), lambda p, a, q, b, m: (p, a, q, b, m, 0))
        out_spec = pl.BlockSpec(
            (1, 1, 1, 1, TM, L2), lambda p, a, q, b, m: (p, b, q, a, m, 0))
        out_shape = jax.ShapeDtypeStruct((P, B, Q, A, M2, L2), x.dtype)
        kernel = _copy_kernel

    out = pl.pallas_call(
        kernel,
        out_shape=out_shape,
        grid_spec=pltpu.PrefetchScalarGridSpec(
            num_scalar_prefetch=0,
            grid=grid,
            in_specs=[in_spec],
            out_specs=out_spec,
        ),
        compiler_params=pltpu.CompilerParams(
            dimension_semantics=("parallel",) * len(grid),
            vmem_limit_bytes=_VMEM_LIMIT_BYTES,
        ),
        cost_estimate=pl.CostEstimate(
            flops=0,
            transcendentals=0,
            bytes_accessed=2 * int(x.size) * itemsize,
        ),
    )(xr)

    # Pure-metadata reshape back to the full transposed shape.
    return out.reshape(out_full_shape)


if __name__ == "__main__":
    key = jax.random.PRNGKey(0)
    k1, k2 = jax.random.split(key)

    # Extralonger usage: (batch, time, nodes, hidden)
    x = jax.random.normal(k1, (2, 8, 16, 32), dtype=jnp.float32)

    # Case 1: TransposeX(1, 2) — swap time and node axes (primary usage, pure copy path).
    y = jax.block_until_ready(transpose_x(x, 1, 2))
    ref = jnp.swapaxes(x, 1, 2)
    assert y.shape == ref.shape and y.dtype == ref.dtype
    np.testing.assert_array_equal(np.asarray(y), np.asarray(ref))

    # Case 2: TransposeX(0, 2) — leading axis swapped; still tiled & pipelined.
    y2 = jax.block_until_ready(transpose_x(x, 0, 2))
    ref2 = jnp.swapaxes(x, 0, 2)
    assert y2.shape == ref2.shape and y2.dtype == ref2.dtype
    np.testing.assert_array_equal(np.asarray(y2), np.asarray(ref2))

    # Case 3: lane-dense tiles (hidden = 128) exercising 128-wide output slabs.
    x3 = jax.random.normal(k2, (2, 8, 16, 128), dtype=jnp.float32)
    y3 = jax.block_until_ready(transpose_x(x3, 1, 2))
    ref3 = jnp.swapaxes(x3, 1, 2)
    assert y3.shape == ref3.shape and y3.dtype == ref3.dtype
    np.testing.assert_array_equal(np.asarray(y3), np.asarray(ref3))

    # Case 4: swap involving the last (lane) axis — 128x128 whole-vreg XLU path.
    x4 = jax.random.normal(k2, (4, 128, 128), dtype=jnp.float32)
    y4 = jax.block_until_ready(transpose_x(x4, 1, 2))
    ref4 = jnp.swapaxes(x4, 1, 2)
    assert y4.shape == ref4.shape and y4.dtype == ref4.dtype
    np.testing.assert_array_equal(np.asarray(y4), np.asarray(ref4))

    print("KERNEL_OK")
</pallas_src>

<mosaic_0001>
module attributes {stable_mosaic.version = 11 : i64} {
  func.func @_copy_kernel(%arg0: i32, %arg1: i32, %arg2: i32, %arg3: i32, %arg4: i32, %arg5: memref<1x1x1x1x1x32xf32, #tpu.memory_space<vmem>>, %arg6: memref<1x1x1x1x1x32xf32, #tpu.memory_space<vmem>>) attributes {dimension_semantics = [#tpu.dimension_semantics<parallel>, #tpu.dimension_semantics<parallel>, #tpu.dimension_semantics<parallel>, #tpu.dimension_semantics<parallel>, #tpu.dimension_semantics<parallel>], iteration_bounds = array<i64: 2, 8, 1, 16, 1>, scalar_prefetch = 0 : i64, scratch_operands = 0 : i64, tpu.core_type = #tpu.core_type<tc>, window_params = [{transform_indices = @transform_0, window_bounds = array<i64: 1, 1, 1, 1, 1, 32>}, {transform_indices = @transform_1, window_bounds = array<i64: 1, 1, 1, 1, 1, 32>}]} {
    %c0 = arith.constant 0 : index
    %c0_0 = arith.constant 0 : index
    %c0_1 = arith.constant 0 : index
    %c0_2 = arith.constant 0 : index
    %c0_3 = arith.constant 0 : index
    %c0_4 = arith.constant 0 : index
    %0 = vector.load %arg5[%c0, %c0_0, %c0_1, %c0_2, %c0_3, %c0_4] : memref<1x1x1x1x1x32xf32, #tpu.memory_space<vmem>>, vector<1x1x1x1x1x32xf32>
    %c0_5 = arith.constant 0 : index
    %c0_6 = arith.constant 0 : index
    %c0_7 = arith.constant 0 : index
    %c0_8 = arith.constant 0 : index
    %c0_9 = arith.constant 0 : index
    %c0_10 = arith.constant 0 : index
    %1 = vector.load %arg6[%c0_5, %c0_6, %c0_7, %c0_8, %c0_9, %c0_10] : memref<1x1x1x1x1x32xf32, #tpu.memory_space<vmem>>, vector<1x1x1x1x1x32xf32>
    tpu.vector_store %arg6[%c0_5, %c0_6, %c0_7, %c0_8, %c0_9, %c0_10], %0 {strides = array<i32>} : memref<1x1x1x1x1x32xf32, #tpu.memory_space<vmem>>, vector<1x1x1x1x1x32xf32>,
    return
  }
  func.func @transform_0(%arg0: i32, %arg1: i32, %arg2: i32, %arg3: i32, %arg4: i32) -> (i32, i32, i32, i32, i32, i32) {
    %c0_i32 = arith.constant 0 : i32
    %c0_i32_0 = arith.constant 0 : i32
    return %arg0, %arg1, %arg2, %arg3, %arg4, %c0_i32 : i32, i32, i32, i32, i32, i32
  }
  func.func @transform_1(%arg0: i32, %arg1: i32, %arg2: i32, %arg3: i32, %arg4: i32) -> (i32, i32, i32, i32, i32, i32) {
    %c0_i32 = arith.constant 0 : i32
    %c0_i32_0 = arith.constant 0 : i32
    return %arg0, %arg3, %arg2, %arg1, %arg4, %c0_i32 : i32, i32, i32, i32, i32, i32
  }
}

</mosaic_0001>

<llo_original>
// kernel: tpu_custom_call.1
$region0: #{tpu_custom_call.1}
  #allocation0 [shape = 'u32[]', space=smem, size = 0x4, offset = 0x4, fixed_abs, tag = 'smem constant byte address 0x4 - core index']
  #allocation1 [shape = 'u32[144,128]{1,0:T(1,128)}', space=vmem, size = 0x12000, scoped, tag = 'internal scratch']
  %s0 = inlined_call_operand.hbm [shape: f32[2,8,1,16,1,32], index: 0, kind: input, shape index: {}]
  %s1 = inlined_call_operand.hbm [shape: f32[2,16,1,8,1,32], index: 1, kind: output, shape index: {}]
  %s2 = sld [smem:[#allocation0]]
  $region41: #{tpu_custom_call.1} parent=0
    _
  %s4 = ssub.s32 1, %s2
  %s5 = scalar_select 0, %s4, %s2
  $region1: #{tpu_custom_call.1} parent=0
    #allocation2 [shape = 'u8[1024]{0}', space=vmem, size = 0x400, scoped, tag = 'input window, operand 0']
    #allocation3 [shape = 's32[2]{0}', space=sflag, size = 0x8, scoped, tag = 'scoped memory for tpu_custom_call.1']
    #allocation4 [shape = 's32[2]{0}', space=sflag, size = 0x8, scoped, tag = 'scoped memory for tpu_custom_call.1']
    #allocation5 [shape = 'u8[1024]{0}', space=vmem, size = 0x400, scoped, tag = 'output window, operand 0']
    %6 = vsyncpa [#allocation3], 0
    %s7 = scalar_lea.sflag [#allocation3], 1
    %8 = vsyncpa %s7, 0
    %9 = vsyncpa [#allocation4], 0
    %s10 = scalar_lea.sflag [#allocation4], 1
    %11 = vsyncpa %s10, 0
    loop: start=0, step=1, limit=258
    $region2: #{tpu_custom_call.1} parent=1 // loop_pre_header
      _
    $region3: #{tpu_custom_call.1} parent=1 // loop_header
      %s13 = sphi 0, %s17
      %p14 = scmp.ge.s32.totalorder %s13, 258
      %s20 = sphi 0, %s53
      %s21 = sphi 0, %s49
      %s22 = sphi 0, %s45
      %s23 = sphi 0, %s41
      %s24 = sphi 0, %s37
      %s25 = sphi 0, %s20
      %s26 = sphi 0, %s21
      %s27 = sphi 0, %s22
      %s28 = sphi 0, %s23
      %s29 = sphi 0, %s24
      %s30 = sphi 0, %s25
      %s31 = sphi 0, %s26
      %s32 = sphi 0, %s27
      %s33 = sphi 0, %s28
      %s34 = sphi 0, %s29
      %s64 = sphi 0, %s66
      %s67 = sphi 0, %s64
      %s68 = sphi 0, %s67
      %s84 = sphi 0, %s68
      %s98 = sphi 0, %s100
      %s101 = sphi 0, %s98
      %s102 = sphi 0, %s101
      %s118 = sphi 0, %s102
    $region4: #{tpu_custom_call.1} parent=1 // loop_header_branch
      %16 = sbr.rel (%p14) target = $region8
    $region5: #{tpu_custom_call.1} parent=1 // loop_body
      %s18 = ssub.s32 %s13, 1
      %s19 = ssub.s32 %s13, 2
      %s35 = sadd.s32 1, %s24
      %p36 = scmp.ge.s32.totalorder %s35, 1
      %s37 = scalar_select %p36, 0, %s35
      %s38 = sadd.s32 1, %s23
      %s39 = scalar_select %p36, %s38, %s23
      %p40 = scmp.ge.s32.totalorder %s39, 16
      %s41 = scalar_select %p40, 0, %s39
      %s42 = sadd.s32 1, %s22
      %s43 = scalar_select %p40, %s42, %s22
      %p44 = scmp.ge.s32.totalorder %s43, 1
      %s45 = scalar_select %p44, 0, %s43
      %s46 = sadd.s32 1, %s21
      %s47 = scalar_select %p44, %s46, %s21
      %p48 = scmp.ge.s32.totalorder %s47, 8
      %s49 = scalar_select %p48, 0, %s47
      %s50 = sadd.s32 1, %s20
      %s51 = scalar_select %p48, %s50, %s20
      %p52 = scmp.ge.s32.totalorder %s51, 2
      %s53 = scalar_select %p52, 0, %s51
      %s54 = ssub.s32 %s20, %s53
      %s55 = ssub.s32 %s21, %s49
      %s56 = sor.u32 %s54, %s55
      %s57 = ssub.s32 %s22, %s45
      %s58 = sor.u32 %s56, %s57
      %s59 = ssub.s32 %s23, %s41
      %s60 = sor.u32 %s58, %s59
      %s61 = ssub.s32 %s24, %s37
      %s62 = sor.u32 %s60, %s61
      %p63 = scmp.eq.s32.totalorder %s62, 0
      %s65 = sadd.s32 %s64, 1
      %s66 = scalar_select %p63, %s64, %s65
      %p69 = pneg %p63
      %p70 = scmp.eq.s32.totalorder %s13, 255
      %p71 = por %p69, %p70
      %p72 = scmp.ne.s32.totalorder %s64, %s67
      %p73 = scmp.eq.s32.totalorder %s13, 0
      %p74 = por %p72, %p73
      %p75 = scmp.ne.s32.totalorder %s64, %s67
      %p76 = scmp.eq.s32.totalorder %s18, 255
      %p77 = por %p75, %p76
      %p78 = scmp.ne.s32.totalorder %s67, %s68
      %p79 = scmp.eq.s32.totalorder %s18, 0
      %p80 = por %p78, %p79
      %p81 = scmp.ne.s32.totalorder %s67, %s68
      %p82 = scmp.eq.s32.totalorder %s19, 255
      %p83 = por %p81, %p82
      %p85 = scmp.ne.s32.totalorder %s68, %s84
      %p86 = scmp.eq.s32.totalorder %s19, 0
      %p87 = por %p85, %p86
      %s88 = ssub.s32 %s20, %s53
      %s89 = ssub.s32 %s23, %s41
      %s90 = sor.u32 %s88, %s89
      %s91 = ssub.s32 %s22, %s45
      %s92 = sor.u32 %s90, %s91
      %s93 = ssub.s32 %s21, %s49
      %s94 = sor.u32 %s92, %s93
      %s95 = ssub.s32 %s24, %s37
      %s96 = sor.u32 %s94, %s95
      %p97 = scmp.eq.s32.totalorder %s96, 0
      %s99 = sadd.s32 %s98, 1
      %s100 = scalar_select %p97, %s98, %s99
      %p103 = pneg %p97
      %p104 = scmp.eq.s32.totalorder %s13, 255
      %p105 = por %p103, %p104
      %p106 = scmp.ne.s32.totalorder %s98, %s101
      %p107 = scmp.eq.s32.totalorder %s13, 0
      %p108 = por %p106, %p107
      %p109 = scmp.ne.s32.totalorder %s98, %s101
      %p110 = scmp.eq.s32.totalorder %s18, 255
      %p111 = por %p109, %p110
      %p112 = scmp.ne.s32.totalorder %s101, %s102
      %p113 = scmp.eq.s32.totalorder %s18, 0
      %p114 = por %p112, %p113
      %p115 = scmp.ne.s32.totalorder %s101, %s102
      %p116 = scmp.eq.s32.totalorder %s19, 255
      %p117 = por %p115, %p116
      %p119 = scmp.ne.s32.totalorder %s102, %s118
      %p120 = scmp.eq.s32.totalorder %s19, 0
      %p121 = por %p119, %p120
      %p122 = scmp.le.s32.totalorder 1, %s13
      %p123 = scmp.lt.s32.totalorder %s13, 257
      %p124 = pnand %p122, %p123
      %p125 = pneg %p124
      // Predicated region
      $region9: #{tpu_custom_call.1} parent=5 // pred_check
        _
      $region10: #{tpu_custom_call.1} parent=5 // pred_check_branch
        %127 = sbr.rel (%p124) target = $region12
      $region11: #{tpu_custom_call.1} parent=5 // pred_region
        %s128 = ssub.s32 %s13, 1
      $region12: #{tpu_custom_call.1} parent=5 // pred_fallthru
        _
      %p129 = scmp.lt.s32.totalorder %s13, 256
      // Predicated region
      $region13: #{tpu_custom_call.1} parent=5 // pred_check
        %p130 = pneg %p129
      $region14: #{tpu_custom_call.1} parent=5 // pred_check_branch
        %132 = sbr.rel (%p130) target = $region16
      $region15: #{tpu_custom_call.1} parent=5 // pred_region
        // Predicated region
        $region17: #{tpu_custom_call.1} parent=15 // pred_check
          %p133 = pneg %p74
        $region18: #{tpu_custom_call.1} parent=15 // pred_check_branch
          %135 = sbr.rel (%p133) target = $region20
        $region19: #{tpu_custom_call.1} parent=15 // pred_region
          %s136 = sand.u32 %s64, 1
          %s137 = scalar_lea.sflag [#allocation3], %s136
          %s138 = sand.u32 %s64, 1
          %s139 = scalar_lea.vmem [#allocation2], %s138
          %s141 = ssub.s32 16, 16
          %142 = vsyncadd %s137, %s141
          %s143 = sadd.s32 %s24, %s23
          %s144 = smul.addr %s22, 16
          %s145 = sadd.s32 %s143, %s144
          %s146 = smul.addr %s21, 16
          %s147 = sadd.s32 %s145, %s146
          %s148 = smul.addr %s20, 128
          %s149 = sadd.s32 %s147, %s148
          %s150 = smul.addr %s149, 16
          %s151 = scalar_lea.hbm %s0, %s150
          %s153 = sshll.u32 %s139, 4
          %s154 = int_to_ptr.vmem [resolvable:$true] %s153
          %156 = dma.hbm_to_vmem [thread:$0]  %s151, 16, %s154, %s137
        $region20: #{tpu_custom_call.1} parent=15 // pred_fallthru
          _
      $region16: #{tpu_custom_call.1} parent=5 // pred_fallthru
        _
      %p157 = scmp.le.s32.totalorder 1, %s13
      %p158 = scmp.lt.s32.totalorder %s13, 257
      %p159 = pnand %p157, %p158
      %p160 = pneg %p159
      // Predicated region
      $region21: #{tpu_custom_call.1} parent=5 // pred_check
        _
      $region22: #{tpu_custom_call.1} parent=5 // pred_check_branch
        %162 = sbr.rel (%p159) target = $region24
      $region23: #{tpu_custom_call.1} parent=5 // pred_region
        %s163 = ssub.s32 %s13, 1
        %s164 = sand.u32 %s67, 1
        %s165 = scalar_lea.sflag [#allocation3], %s164
        %s166 = sand.u32 %s67, 1
        %s167 = scalar_lea.vmem [#allocation2], %s166
        // Predicated region
        $region25: #{tpu_custom_call.1} parent=23 // pred_check
          %p168 = pneg %p80
        $region26: #{tpu_custom_call.1} parent=23 // pred_check_branch
          %170 = sbr.rel (%p168) target = $region28
        $region27: #{tpu_custom_call.1} parent=23 // pred_region
          %171 = dma.done %s165, 16
        $region28: #{tpu_custom_call.1} parent=23 // pred_fallthru
          _
        %s172 = sand.u32 %s67, 1
        %s173 = scalar_lea.sflag [#allocation3], %s172
        %s174 = sand.u32 %s67, 1
        %s175 = scalar_lea.vmem [#allocation2], %s174
        %p176 = pneg %p80
        %p177 = pneg %p77
        %p178 = pneg %p114
        %p179 = pneg %p111
        %s180 = sand.u32 %s101, 1
        %s181 = scalar_lea.sflag [#allocation4], %s180
        %s182 = sand.u32 %s101, 1
        %s183 = scalar_lea.vmem [#allocation5], %s182
        %v184 = vld [vmem:[%s167] sm:$0x1]
        %vm185 = vcmask 253952
        %186 = vst.msk [vmem:[%s183] sm:$0x1] %vm185, %v184
        %s187 = sand.u32 %s101, 1
        %s188 = scalar_lea.sflag [#allocation4], %s187
        %s189 = sand.u32 %s101, 1
        %s190 = scalar_lea.vmem [#allocation5], %s189
        // Predicated region
        $region29: #{tpu_custom_call.1} parent=23 // pred_check
          %p191 = pneg %p111
        $region30: #{tpu_custom_call.1} parent=23 // pred_check_branch
          %193 = sbr.rel (%p191) target = $region32
        $region31: #{tpu_custom_call.1} parent=23 // pred_region
          %s195 = ssub.s32 16, 16
          %196 = vsyncadd %s188, %s195
          %s197 = sadd.s32 %s29, %s26
          %s198 = smul.addr %s27, 8
          %s199 = sadd.s32 %s197, %s198
          %s200 = smul.addr %s28, 8
          %s201 = sadd.s32 %s199, %s200
          %s202 = smul.addr %s25, 128
          %s203 = sadd.s32 %s201, %s202
          %s204 = smul.addr %s203, 16
          %s205 = scalar_lea.hbm %s1, %s204
          %s207 = sshll.u32 %s190, 4
          %s208 = int_to_ptr.vmem [resolvable:$true] %s207
          %210 = dma.vmem_to_hbm [thread:$0]  %s208, 16, %s205, %s188
        $region32: #{tpu_custom_call.1} parent=23 // pred_fallthru
          _
      $region24: #{tpu_custom_call.1} parent=5 // pred_fallthru
        _
      %p211 = scmp.le.s32.totalorder 2, %s13
      // Predicated region
      $region33: #{tpu_custom_call.1} parent=5 // pred_check
        %p212 = pneg %p211
      $region34: #{tpu_custom_call.1} parent=5 // pred_check_branch
        %214 = sbr.rel (%p212) target = $region36
      $region35: #{tpu_custom_call.1} parent=5 // pred_region
        %s215 = ssub.s32 %s13, 2
        // Predicated region
        $region37: #{tpu_custom_call.1} parent=35 // pred_check
          %p216 = pneg %p117
        $region38: #{tpu_custom_call.1} parent=35 // pred_check_branch
          %218 = sbr.rel (%p216) target = $region40
        $region39: #{tpu_custom_call.1} parent=35 // pred_region
          %s219 = sand.u32 %s102, 1
          %s220 = scalar_lea.sflag [#allocation4], %s219
          %s221 = sand.u32 %s102, 1
          %s222 = scalar_lea.vmem [#allocation5], %s221
          %223 = dma.done %s220, 16
        $region40: #{tpu_custom_call.1} parent=35 // pred_fallthru
          _
      $region36: #{tpu_custom_call.1} parent=5 // pred_fallthru
        _
    $region6: #{tpu_custom_call.1} parent=1 // loop_footer
      %s17 = sadd.s32 1, %s13
    $region7: #{tpu_custom_call.1} parent=1 // loop_footer_branch
      %12 = sbr.rel target = $region3
    $region8: #{tpu_custom_call.1} parent=1 // loop_exit
      _
    %224 = vsyncpa [#allocation3], 1
    %s225 = scalar_lea.sflag [#allocation3], 1
    %226 = vsyncpa %s225, 1
    %227 = vsyncpa [#allocation4], 1
    %s228 = scalar_lea.sflag [#allocation4], 1
    %229 = vsyncpa %s228, 1

</llo_original>
